<compile_context>
chip_gen: v6e
topology: v6e:2x2x1
jax: 0.10.0
libtpu: 0.0.40
codegen_flags: <defaults>
</compile_context>

<pallas_src>
import math
import functools

import jax
import jax.numpy as jnp
from jax.experimental import pallas as pl
from jax.experimental.pallas import tpu as pltpu


IN_DIM = 2
HID_DIM = 40
OUT_DIM = 3

HID_PAD = 128   # lane-padded hidden width (zeros; ReLU preserves zeros)


def _round_up(x, m):
    return (x + m - 1) // m * m


def _net2_kernel(x_ref, w1_ref, b1_ref, w2_ref, b2_ref, o_ref):
    # x_ref: (TB, 2), w1_ref: (2, 128), b1_ref: (1, 128),
    # w2_ref: (128, 3), b2_ref: (1, 3), o_ref: (TB, 3)
    x = x_ref[...]                       # f32
    w1 = w1_ref[...]

    # Layer 1 on the VPU: two broadcast FMAs replace the (TB,2)@(2,128) matmul
    # whose contraction dim would be pure MXU padding.
    h = x[:, 0:1] * w1[0:1, :] + x[:, 1:2] * w1[1:2, :] + b1_ref[...]
    h = jnp.maximum(h, 0.0)              # ReLU; padded lanes stay exactly 0

    # Layer 2: (TB,128) @ (128,3) on the MXU. Zero-padded rows of w2 line up
    # with the exactly-zero padded hidden lanes, so nothing leaks.
    out = jnp.dot(h, w2_ref[...], preferred_element_type=jnp.float32)
    o_ref[...] = (out + b2_ref[...]).astype(o_ref.dtype)


def prepare_params(w1, b1, w2, b2):
    """Zero-pad parameters once (call at init, NOT per forward).

    w1: (2, 40)  -> (2, 128)      b1: (1, 40) -> (1, 128)
    w2: (40, 3)  -> (128, 3)      b2: (1, 3)  -> (1, 3)
    Padding is exact zeros so padded lanes never leak into the valid output.
    """
    w1p = jnp.pad(w1, ((0, 0), (0, HID_PAD - HID_DIM)))
    b1p = jnp.pad(b1, ((0, 0), (0, HID_PAD - HID_DIM)))
    w2p = jnp.pad(w2, ((0, HID_PAD - HID_DIM), (0, 0)))
    b2p = b2
    return w1p, b1p, w2p, b2p


def _choose_tile(B, tile_b):
    """Batch tile: multiple of 8 sublanes, <= tile_b, and >= 2 grid steps
    whenever B > 8 so both v7x TensorCores get a tile."""
    B8 = _round_up(B, 8)
    half = _round_up(pl.cdiv(B8, 2), 8) if B8 > 8 else B8
    TB = min(tile_b, max(8, half))
    Bp = _round_up(B8, TB)
    return TB, Bp


@functools.partial(jax.jit, static_argnames=("tile_b",))
def net2_forward(x, w1p, b1p, w2p, b2p, *, tile_b=1024):
    """x: (B, 2) float32; params already padded via prepare_params().
    Returns (B, 3) float32 Q-values."""
    B = x.shape[0]
    TB, Bp = _choose_tile(B, tile_b)
    x_p = jnp.pad(x, ((0, Bp - B), (0, 0)))

    grid = (Bp // TB,)

    cost = pl.CostEstimate(
        flops=2 * Bp * (IN_DIM * HID_DIM + HID_DIM * OUT_DIM),
        transcendentals=0,
        bytes_accessed=(x_p.size + w1p.size + b1p.size + w2p.size + b2p.size
                        + Bp * OUT_DIM) * 4,
    )

    out_padded = pl.pallas_call(
        _net2_kernel,
        out_shape=jax.ShapeDtypeStruct((Bp, OUT_DIM), jnp.float32),
        grid=grid,
        in_specs=[
            pl.BlockSpec((TB, IN_DIM), lambda i: (i, 0)),        # batch-tiled
            pl.BlockSpec((IN_DIM, HID_PAD), lambda i: (0, 0)),   # VMEM-resident
            pl.BlockSpec((1, HID_PAD), lambda i: (0, 0)),
            pl.BlockSpec((HID_PAD, OUT_DIM), lambda i: (0, 0)),
            pl.BlockSpec((1, OUT_DIM), lambda i: (0, 0)),
        ],
        out_specs=pl.BlockSpec((TB, OUT_DIM), lambda i: (i, 0)),
        compiler_params=pltpu.CompilerParams(
            dimension_semantics=("parallel",)),   # shards batch tiles on v7x
        cost_estimate=cost,
    )(x_p, w1p, b1p, w2p, b2p)

    # Only the padded batch rows are dropped; no lane slice is needed anymore.
    # TODO(synk): for the action-selection path, fuse argmax over the 3
    # Q-values (and epsilon-greedy via pltpu.prng_*) into the kernel epilogue.
    return out_padded[:B]


def init_params(key):
    """Deterministic init mimicking torch.nn.Linear default:
    U(-1/sqrt(fan_in), 1/sqrt(fan_in)) for both weight and bias."""
    k1, k2, k3, k4 = jax.random.split(key, 4)
    bound1 = 1.0 / math.sqrt(IN_DIM)
    bound2 = 1.0 / math.sqrt(HID_DIM)
    # Stored as (in, out) = transpose of torch's (out, in) weight layout.
    w1 = jax.random.uniform(k1, (IN_DIM, HID_DIM), jnp.float32, -bound1, bound1)
    b1 = jax.random.uniform(k2, (1, HID_DIM), jnp.float32, -bound1, bound1)
    w2 = jax.random.uniform(k3, (HID_DIM, OUT_DIM), jnp.float32, -bound2, bound2)
    b2 = jax.random.uniform(k4, (1, OUT_DIM), jnp.float32, -bound2, bound2)
    return w1, b1, w2, b2


def reference_forward(x, w1, b1, w2, b2):
    h = jnp.maximum(x @ w1 + b1, 0.0)
    return h @ w2 + b2


if __name__ == "__main__":
    key = jax.random.PRNGKey(0)
    k_params, k_x = jax.random.split(key)

    w1, b1, w2, b2 = init_params(k_params)
    # Pad once at init; reuse padded params for every forward call.
    w1p, b1p, w2p, b2p = prepare_params(w1, b1, w2, b2)
    w1p, b1p, w2p, b2p = jax.block_until_ready((w1p, b1p, w2p, b2p))

    # MountainCar-v0 observations: (position, velocity) -> state dim 2.
    batch = 8
    x = jax.random.uniform(k_x, (batch, IN_DIM), jnp.float32, -1.0, 1.0)

    out = net2_forward(x, w1p, b1p, w2p, b2p)
    out = jax.block_until_ready(out)

    ref = reference_forward(x, w1, b1, w2, b2)
    assert out.shape == (batch, OUT_DIM)
    assert jnp.allclose(out, ref, atol=1e-5, rtol=1e-5), "mismatch vs reference"

    # Also exercise a replay-buffer-sized, non-multiple-of-tile batch
    # (this produces a 2-step grid -> both TensorCores busy on v7x).
    big_b = 300
    xb = jax.random.uniform(jax.random.PRNGKey(1), (big_b, IN_DIM),
                            jnp.float32, -1.0, 1.0)
    out_b = jax.block_until_ready(net2_forward(xb, w1p, b1p, w2p, b2p))
    ref_b = reference_forward(xb, w1, b1, w2, b2)
    assert out_b.shape == (big_b, OUT_DIM)
    assert jnp.allclose(out_b, ref_b, atol=1e-5, rtol=1e-5), "mismatch (big batch)"

    print("KERNEL_OK")
</pallas_src>

<mosaic_0001>
module attributes {stable_mosaic.version = 11 : i64} {
  func.func @_net2_kernel(%arg0: i32, %arg1: memref<8x2xf32, #tpu.memory_space<vmem>>, %arg2: memref<2x128xf32, #tpu.memory_space<vmem>>, %arg3: memref<1x128xf32, #tpu.memory_space<vmem>>, %arg4: memref<128x3xf32, #tpu.memory_space<vmem>>, %arg5: memref<1x3xf32, #tpu.memory_space<vmem>>, %arg6: memref<8x3xf32, #tpu.memory_space<vmem>>) attributes {dimension_semantics = [#tpu.dimension_semantics<parallel>], iteration_bounds = array<i64: 1>, scalar_prefetch = 0 : i64, scratch_operands = 0 : i64, tpu.core_type = #tpu.core_type<tc>, window_params = [{transform_indices = @transform_0, window_bounds = array<i64: 8, 2>}, {pipeline_mode = #tpu.pipeline_mode<synchronous>, transform_indices = @transform_1, window_bounds = array<i64: 2, 128>}, {pipeline_mode = #tpu.pipeline_mode<synchronous>, transform_indices = @transform_2, window_bounds = array<i64: 1, 128>}, {pipeline_mode = #tpu.pipeline_mode<synchronous>, transform_indices = @transform_3, window_bounds = array<i64: 128, 3>}, {pipeline_mode = #tpu.pipeline_mode<synchronous>, transform_indices = @transform_4, window_bounds = array<i64: 1, 3>}, {transform_indices = @transform_5, window_bounds = array<i64: 8, 3>}]} {
    %c0 = arith.constant 0 : index
    %c0_0 = arith.constant 0 : index
    %0 = vector.load %arg1[%c0, %c0_0] : memref<8x2xf32, #tpu.memory_space<vmem>>, vector<8x2xf32>
    %c0_1 = arith.constant 0 : index
    %c0_2 = arith.constant 0 : index
    %1 = vector.load %arg2[%c0_1, %c0_2] : memref<2x128xf32, #tpu.memory_space<vmem>>, vector<2x128xf32>
    %2 = vector.extract_strided_slice %0 {offsets = [0, 0], sizes = [8, 1], strides = [1, 1]} : vector<8x2xf32> to vector<8x1xf32>
    %3 = vector.extract_strided_slice %1 {offsets = [0, 0], sizes = [1, 128], strides = [1, 1]} : vector<2x128xf32> to vector<1x128xf32>
    %4 = vector.broadcast %2 : vector<8x1xf32> to vector<8x128xf32>
    %5 = vector.broadcast %3 : vector<1x128xf32> to vector<8x128xf32>
    %6 = arith.mulf %4, %5 : vector<8x128xf32>
    %7 = vector.extract_strided_slice %0 {offsets = [0, 1], sizes = [8, 1], strides = [1, 1]} : vector<8x2xf32> to vector<8x1xf32>
    %8 = vector.extract_strided_slice %1 {offsets = [1, 0], sizes = [1, 128], strides = [1, 1]} : vector<2x128xf32> to vector<1x128xf32>
    %9 = vector.broadcast %7 : vector<8x1xf32> to vector<8x128xf32>
    %10 = vector.broadcast %8 : vector<1x128xf32> to vector<8x128xf32>
    %11 = arith.mulf %9, %10 : vector<8x128xf32>
    %12 = arith.addf %6, %11 : vector<8x128xf32>
    %c0_3 = arith.constant 0 : index
    %c0_4 = arith.constant 0 : index
    %13 = vector.load %arg3[%c0_3, %c0_4] : memref<1x128xf32, #tpu.memory_space<vmem>>, vector<1x128xf32>
    %14 = vector.broadcast %13 : vector<1x128xf32> to vector<8x128xf32>
    %15 = arith.addf %12, %14 : vector<8x128xf32>
    %cst = arith.constant 0.000000e+00 : f32
    %16 = vector.broadcast %cst : f32 to vector<8x128xf32>
    %17 = arith.maximumf %15, %16 : vector<8x128xf32>
    %c0_5 = arith.constant 0 : index
    %c0_6 = arith.constant 0 : index
    %18 = vector.load %arg4[%c0_5, %c0_6] : memref<128x3xf32, #tpu.memory_space<vmem>>, vector<128x3xf32>
    %cst_7 = arith.constant dense<0.000000e+00> : vector<8x3xf32>
    %19 = tpu.matmul %17, %18, %cst_7 {dimension_numbers = #tpu.dot_dimension_numbers<[1], [0], [0], [1], [0, 0, 1, 1], [], []>} : vector<8x128xf32>, vector<128x3xf32>, vector<8x3xf32> -> vector<8x3xf32>
    %c0_8 = arith.constant 0 : index
    %c0_9 = arith.constant 0 : index
    %20 = vector.load %arg5[%c0_8, %c0_9] : memref<1x3xf32, #tpu.memory_space<vmem>>, vector<1x3xf32>
    %21 = vector.broadcast %20 : vector<1x3xf32> to vector<8x3xf32>
    %22 = arith.addf %19, %21 : vector<8x3xf32>
    %c0_10 = arith.constant 0 : index
    %c0_11 = arith.constant 0 : index
    %23 = vector.load %arg6[%c0_10, %c0_11] : memref<8x3xf32, #tpu.memory_space<vmem>>, vector<8x3xf32>
    tpu.vector_store %arg6[%c0_10, %c0_11], %22 {strides = array<i32>} : memref<8x3xf32, #tpu.memory_space<vmem>>, vector<8x3xf32>,
    return
  }
  func.func @transform_0(%arg0: i32) -> (i32, i32) {
    %c0_i32 = arith.constant 0 : i32
    %c0_i32_0 = arith.constant 0 : i32
    return %arg0, %c0_i32 : i32, i32
  }
  func.func @transform_1(%arg0: i32) -> (i32, i32) {
    %c0_i32 = arith.constant 0 : i32
    %c0_i32_0 = arith.constant 0 : i32
    %c0_i32_1 = arith.constant 0 : i32
    return %c0_i32, %c0_i32_0 : i32, i32
  }
  func.func @transform_2(%arg0: i32) -> (i32, i32) {
    %c0_i32 = arith.constant 0 : i32
    %c0_i32_0 = arith.constant 0 : i32
    %c0_i32_1 = arith.constant 0 : i32
    return %c0_i32, %c0_i32_0 : i32, i32
  }
  func.func @transform_3(%arg0: i32) -> (i32, i32) {
    %c0_i32 = arith.constant 0 : i32
    %c0_i32_0 = arith.constant 0 : i32
    %c0_i32_1 = arith.constant 0 : i32
    return %c0_i32, %c0_i32_0 : i32, i32
  }
  func.func @transform_4(%arg0: i32) -> (i32, i32) {
    %c0_i32 = arith.constant 0 : i32
    %c0_i32_0 = arith.constant 0 : i32
    %c0_i32_1 = arith.constant 0 : i32
    return %c0_i32, %c0_i32_0 : i32, i32
  }
  func.func @transform_5(%arg0: i32) -> (i32, i32) {
    %c0_i32 = arith.constant 0 : i32
    %c0_i32_0 = arith.constant 0 : i32
    return %arg0, %c0_i32 : i32, i32
  }
}

</mosaic_0001>

<llo_original>
// kernel: net2_forward.1
$region0: #{net2_forward.1}
  #allocation0 [shape = 'u32[]', space=smem, size = 0x4, offset = 0x4, fixed_abs, tag = 'smem constant byte address 0x4 - core index']
  #allocation1 [shape = 'u32[144,128]{1,0:T(1,128)}', space=vmem, size = 0x12000, scoped, tag = 'internal scratch']
  %s0 = inlined_call_operand.vmem [shape: f32[8,2], index: 0, kind: input, shape index: {}]
  %s1 = inlined_call_operand.vmem [shape: f32[2,128], index: 1, kind: input, shape index: {}]
  %s2 = inlined_call_operand.vmem [shape: f32[1,128], index: 2, kind: input, shape index: {}]
  %s3 = inlined_call_operand.vmem [shape: f32[128,3], index: 3, kind: input, shape index: {}]
  %s4 = inlined_call_operand.vmem [shape: f32[1,3], index: 4, kind: input, shape index: {}]
  %s5 = inlined_call_operand.vmem [shape: f32[8,3], index: 5, kind: output, shape index: {}]
  %s6 = sld [smem:[#allocation0]]
  $region30: #{net2_forward.1} parent=0
    _
  %s8 = ssub.s32 1, %s6
  %s9 = scalar_select 0, %s8, %s6
  // Predicated region
  $region2: #{net2_forward.1} parent=0 // pred_check
    _
  $region3: #{net2_forward.1} parent=0 // pred_check_branch
    %11 = sbr.rel (0) target = $region5
  $region4: #{net2_forward.1} parent=0 // pred_region
    _
  $region5: #{net2_forward.1} parent=0 // pred_fallthru
    _
  // Predicated region
  $region6: #{net2_forward.1} parent=0 // pred_check
    _
  $region7: #{net2_forward.1} parent=0 // pred_check_branch
    %13 = sbr.rel (0) target = $region9
  $region8: #{net2_forward.1} parent=0 // pred_region
    _
  $region9: #{net2_forward.1} parent=0 // pred_fallthru
    _
  // Predicated region
  $region10: #{net2_forward.1} parent=0 // pred_check
    _
  $region11: #{net2_forward.1} parent=0 // pred_check_branch
    %15 = sbr.rel (0) target = $region13
  $region12: #{net2_forward.1} parent=0 // pred_region
    _
  $region13: #{net2_forward.1} parent=0 // pred_fallthru
    _
  // Predicated region
  $region14: #{net2_forward.1} parent=0 // pred_check
    _
  $region15: #{net2_forward.1} parent=0 // pred_check_branch
    %17 = sbr.rel (0) target = $region17
  $region16: #{net2_forward.1} parent=0 // pred_region
    _
  $region17: #{net2_forward.1} parent=0 // pred_fallthru
    _
  // Predicated region
  $region18: #{net2_forward.1} parent=0 // pred_check
    _
  $region19: #{net2_forward.1} parent=0 // pred_check_branch
    %19 = sbr.rel (0) target = $region21
  $region20: #{net2_forward.1} parent=0 // pred_region
    _
  $region21: #{net2_forward.1} parent=0 // pred_fallthru
    _
  %v20 = vld [vmem:[%s0] sm:$0xff]
  %v21 = vld [vmem:[%s1] sm:$0x3]
  %23 = vset.pattern.permute.xlu0 0
  %24 = vperm.xlu0 %23, %v20
  %v25 = vpop.permute.xlu0 %24
  %v27 = vlaneseq
  %v28 = vshrl.u32 %v27, 7
  %v29 = vsub.s32 0, %v28
  %v30 = vrot.slane %v21, %v29
  %v31 = vmul.f32 %v25, %v30
  %32 = vset.pattern.permute.xlu0 1
  %33 = vperm.xlu0 %32, %v20
  %v34 = vpop.permute.xlu0 %33
  %v36 = vlaneseq
  %v37 = vshrl.u32 %v36, 7
  %v38 = vsub.s32 1, %v37
  %v39 = vrot.slane %v21, %v38
  %v40 = vmul.f32 %v34, %v39
  %v41 = vadd.f32 %v31, %v40
  %v42 = vld [vmem:[%s2] sm:$0x1]
  %v44 = vlaneseq
  %v45 = vshrl.u32 %v44, 7
  %v46 = vsub.s32 0, %v45
  %v47 = vrot.slane %v42, %v46
  %v49 = vadd.f32 %v41, %v47
  %v50 = vmax.f32 %v49, 0.0
  %v51 = vld [vmem:[%s3] sm:$0xff]
  %v52 = vld [vmem:[%s3 + $0x8] sm:$0xff]
  %v53 = vld [vmem:[%s3 + $0x10] sm:$0xff]
  %v54 = vld [vmem:[%s3 + $0x18] sm:$0xff]
  %v55 = vld [vmem:[%s3 + $0x20] sm:$0xff]
  %v56 = vld [vmem:[%s3 + $0x28] sm:$0xff]
  %v57 = vld [vmem:[%s3 + $0x30] sm:$0xff]
  %v58 = vld [vmem:[%s3 + $0x38] sm:$0xff]
  %v59 = vld [vmem:[%s3 + $0x40] sm:$0xff]
  %v60 = vld [vmem:[%s3 + $0x48] sm:$0xff]
  %v61 = vld [vmem:[%s3 + $0x50] sm:$0xff]
  %v62 = vld [vmem:[%s3 + $0x58] sm:$0xff]
  %v63 = vld [vmem:[%s3 + $0x60] sm:$0xff]
  %v64 = vld [vmem:[%s3 + $0x68] sm:$0xff]
  %v65 = vld [vmem:[%s3 + $0x70] sm:$0xff]
  %v66 = vld [vmem:[%s3 + $0x78] sm:$0xff]
  %v67 = vld [vmem:[%s4] sm:$0x1]
  %v69 = vlaneseq
  %v70 = vshrl.u32 %v69, 7
  %v71 = vsub.s32 0, %v70
  %v72 = vrot.slane %v67, %v71
  %74 = vmatprep.subr.mxu0 0.0
  %75 = vmatpush1.msra.mxu0 %v66
  %76 = vmatprep.subr.mxu0 0.0
  %77 = vmatpush1.msra.mxu0 %v65
  %78 = vmatprep.subr.mxu0 0.0
  %79 = vmatpush1.msra.mxu0 %v64
  %80 = vmatprep.subr.mxu0 0.0
  %81 = vmatpush1.msra.mxu0 %v63
  %82 = vmatprep.subr.mxu0 0.0
  %83 = vmatpush1.msra.mxu0 %v62
  %84 = vmatprep.subr.mxu0 0.0
  %85 = vmatpush1.msra.mxu0 %v61
  %86 = vmatprep.subr.mxu0 0.0
  %87 = vmatpush1.msra.mxu0 %v60
  %88 = vmatprep.subr.mxu0 0.0
  %89 = vmatpush1.msra.mxu0 %v59
  %90 = vmatprep.subr.mxu0 0.0
  %91 = vmatpush1.msra.mxu0 %v58
  %92 = vmatprep.subr.mxu0 0.0
  %93 = vmatpush1.msra.mxu0 %v57
  %94 = vmatprep.subr.mxu0 0.0
  %95 = vmatpush1.msra.mxu0 %v56
  %96 = vmatprep.subr.mxu0 0.0
  %97 = vmatpush1.msra.mxu0 %v55
  %98 = vmatprep.subr.mxu0 0.0
  %99 = vmatpush1.msra.mxu0 %v54
  %100 = vmatprep.subr.mxu0 0.0
  %101 = vmatpush1.msra.mxu0 %v53
  %102 = vmatprep.subr.mxu0 0.0
  %103 = vmatpush1.msra.mxu0 %v52
  %104 = vmatprep.subr.mxu0 0.0
  %105 = vmatpush1.msra.mxu0 %v51
  %106 = vmatprep.subr.mxu0 0.0
  %107 = vmatpush2.msra.mxu0 0.0
  %108 = vmatprep.subr.mxu0 0.0
  %109 = vmatpush2.msra.mxu0 0.0
  %110 = vmatprep.subr.mxu0 0.0
  %111 = vmatpush2.msra.mxu0 0.0
  %112 = vmatprep.subr.mxu0 0.0
  %113 = vmatpush2.msra.mxu0 0.0
  %114 = vmatprep.subr.mxu0 0.0
  %115 = vmatpush2.msra.mxu0 0.0
  %116 = vmatprep.subr.mxu0 0.0
  %117 = vmatpush2.msra.mxu0 0.0
  %118 = vmatprep.subr.mxu0 0.0
  %119 = vmatpush2.msra.mxu0 0.0
  %120 = vmatprep.subr.mxu0 0.0
  %121 = vmatpush2.msra.mxu0 0.0
  %122 = vmatprep.subr.mxu0 0.0
  %123 = vmatpush2.msra.mxu0 0.0
  %124 = vmatprep.subr.mxu0 0.0
  %125 = vmatpush2.msra.mxu0 0.0
  %126 = vmatprep.subr.mxu0 0.0
  %127 = vmatpush2.msra.mxu0 0.0
  %128 = vmatprep.subr.mxu0 0.0
  %129 = vmatpush2.msra.mxu0 0.0
  %130 = vmatprep.subr.mxu0 0.0
  %131 = vmatpush2.msra.mxu0 0.0
  %132 = vmatprep.subr.mxu0 0.0
  %133 = vmatpush2.msra.mxu0 0.0
  %134 = vmatprep.subr.mxu0 0.0
  %135 = vmatpush2.msra.mxu0 0.0
  %136 = vmatprep.subr.mxu0 0.0
  %137 = vmatpush2.msra.mxu0 0.0
  %138 = vmatprep.mubr.f32.mxu0 0.0
  %139 = vmatmul.mubr.f32.gmra.mxu0 %v50
  %v140 = vpop.f32.mrf.mxu0
  %v141 = vadd.f32 %v72, %v140
  %v142 = vpop.f32.mrf.mxu0
  %143 = vdwg.mxu0
  %vm144 = vcmask 23552
  %145 = vst.msk [vmem:[%s5] sm:$0xff] %vm144, %v141
  // Predicated region
  $region22: #{net2_forward.1} parent=0 // pred_check
    _
  $region23: #{net2_forward.1} parent=0 // pred_check_branch
    %147 = sbr.rel (0) target = $region25
  $region24: #{net2_forward.1} parent=0 // pred_region
    _
  $region25: #{net2_forward.1} parent=0 // pred_fallthru
    _
  // Predicated region
  $region26: #{net2_forward.1} parent=0 // pred_check
    _
  $region27: #{net2_forward.1} parent=0 // pred_check_branch
    %149 = sbr.rel (0) target = $region29
  $region28: #{net2_forward.1} parent=0 // pred_region
    _
  $region29: #{net2_forward.1} parent=0 // pred_fallthru
    _

</llo_original>
